<compile_context>
chip_gen: v5e
topology: v5e:2x2
jax: 0.10.0
libtpu: 0.0.40
codegen_flags: <defaults>
</compile_context>

<pallas_src>
import jax
import jax.numpy as jnp
from jax.experimental import pallas as pl
from jax.experimental.pallas import tpu as pltpu

DROPOUT_P = 0.5
INV_KEEP = 1.0 / (1.0 - DROPOUT_P)


def _attn_dropout_kernel(scale_ref, q_ref, kT_ref, v_ref, keep_ref, out_ref):
    # scale_ref: SMEM scalar-prefetch, shape (1,), f32
    scale = scale_ref[0]

    # Fold the pre-softmax temperature into the small (M, D) operand:
    # scale * (q @ kT) == (scale * q) @ kT
    q = q_ref[...] * scale                                              # (M, D)

    # Logits on the MXU, K already transposed in the wrapper.
    s = jnp.dot(q, kT_ref[...], preferred_element_type=jnp.float32)    # (M, N)

    # Numerically-stable softmax numerators; normalization is deferred.
    m = jnp.max(s, axis=-1, keepdims=True)                              # (M, 1)
    e = jnp.exp(s - m)                                                  # (M, N)
    denom = jnp.sum(e, axis=-1, keepdims=True)                          # (M, 1)

    # Dropout keep-mask (values in {0, 1}) applied to unnormalized numerators.
    e_kept = e * keep_ref[...]                                          # (M, N)

    # Second matmul on the masked, unnormalized numerators.
    out = jnp.dot(e_kept, v_ref[...], preferred_element_type=jnp.float32)  # (M, P)

    # Deferred normalization: softmax denominator + 1/(1-p) dropout rescale as
    # a tiny per-row (M, 1) scale on the (M, P) output.
    out_ref[...] = (out * (INV_KEEP / denom)).astype(out_ref.dtype)


def model_forward(v1, v2, v3, scale_factor, dropout_key):
    """v1: (1,1,M,D), v2: (1,1,N,D), v3: (1,N,P) -> (1,1,M,P)."""
    M, D = v1.shape[-2], v1.shape[-1]
    N = v2.shape[-2]
    P = v3.shape[-1]

    q2 = v1.reshape(M, D).astype(jnp.float32)                 # (M, D)
    kT = jnp.transpose(v2.reshape(N, D)).astype(jnp.float32)  # (D, N) — free under XLA fusion
    v2d = v3.reshape(N, P).astype(jnp.float32)                # (N, P)

    # Host-side dropout keep mask (P[keep] = 1 - p), applied inside the kernel.
    keep = jax.random.bernoulli(dropout_key, 1.0 - DROPOUT_P, (M, N)).astype(jnp.float32)

    scale_arr = jnp.asarray(scale_factor, dtype=jnp.float32).reshape(1)

    out2d = pl.pallas_call(
        _attn_dropout_kernel,
        out_shape=jax.ShapeDtypeStruct((M, P), jnp.float32),
        grid_spec=pltpu.PrefetchScalarGridSpec(
            num_scalar_prefetch=1,                                  # scale -> SMEM
            grid=(1,),
            in_specs=[
                pl.BlockSpec((M, D), lambda i, scale: (0, 0)),      # q
                pl.BlockSpec((D, N), lambda i, scale: (0, 0)),      # k^T
                pl.BlockSpec((N, P), lambda i, scale: (0, 0)),      # v
                pl.BlockSpec((M, N), lambda i, scale: (0, 0)),      # keep mask
            ],
            out_specs=pl.BlockSpec((M, P), lambda i, scale: (0, 0)),
        ),
        compiler_params=pltpu.CompilerParams(
            dimension_semantics=("arbitrary",),
        ),
    )(scale_arr, q2, kT, v2d, keep)

    return out2d.reshape(1, 1, M, P)


def _reference(v1, v2, v3, scale_factor, dropout_key):
    """Pure-JAX reference using the same keep mask (for a self-check)."""
    M, D = v1.shape[-2], v1.shape[-1]
    N = v2.shape[-2]
    P = v3.shape[-1]
    q = v1.reshape(M, D).astype(jnp.float32)
    k = v2.reshape(N, D).astype(jnp.float32)
    vv = v3.reshape(N, P).astype(jnp.float32)
    keep = jax.random.bernoulli(dropout_key, 1.0 - DROPOUT_P, (M, N)).astype(jnp.float32)
    s = jnp.dot(q, k.T) * jnp.float32(scale_factor)
    p = jax.nn.softmax(s, axis=-1)
    d = p * keep * INV_KEEP
    return jnp.dot(d, vv).reshape(1, 1, M, P)


if __name__ == "__main__":
    key = jax.random.PRNGKey(0)
    k1, k2, k3, kd = jax.random.split(key, 4)

    # Shapes consistent with the module's forward (see layout comment above).
    v1 = jax.random.normal(k1, (1, 1, 12, 64), dtype=jnp.float32)
    v2 = jax.random.normal(k2, (1, 1, 512, 64), dtype=jnp.float32)
    v3 = jax.random.normal(k3, (1, 512, 5), dtype=jnp.float32)
    scale_factor = 1.0  # nn.Parameter(torch.tensor(1.0)), initialized deterministically

    out = model_forward(v1, v2, v3, scale_factor, dropout_key=kd)
    jax.block_until_ready(out)
    assert out.shape == (1, 1, 12, 5) and out.dtype == jnp.float32

    ref = _reference(v1, v2, v3, scale_factor, dropout_key=kd)
    jax.block_until_ready(ref)
    assert jnp.allclose(out, ref, rtol=1e-3, atol=1e-3), "kernel mismatch vs. reference"

    print("KERNEL_OK")
</pallas_src>

<mosaic_0001>
module attributes {stable_mosaic.version = 11 : i64} {
  func.func @_attn_dropout_kernel(%arg0: i32, %arg1: memref<1xf32, #tpu.memory_space<smem>>, %arg2: memref<12x64xf32, #tpu.memory_space<vmem>>, %arg3: memref<64x512xf32, #tpu.memory_space<vmem>>, %arg4: memref<512x5xf32, #tpu.memory_space<vmem>>, %arg5: memref<12x512xf32, #tpu.memory_space<vmem>>, %arg6: memref<12x5xf32, #tpu.memory_space<vmem>>) attributes {dimension_semantics = [#tpu.dimension_semantics<arbitrary>], iteration_bounds = array<i64: 1>, scalar_prefetch = 1 : i64, scratch_operands = 0 : i64, tpu.core_type = #tpu.core_type<tc>, window_params = [{pipeline_mode = #tpu.pipeline_mode<synchronous>, transform_indices = @transform_0, window_bounds = array<i64: 12, 64>}, {pipeline_mode = #tpu.pipeline_mode<synchronous>, transform_indices = @transform_1, window_bounds = array<i64: 64, 512>}, {pipeline_mode = #tpu.pipeline_mode<synchronous>, transform_indices = @transform_2, window_bounds = array<i64: 512, 5>}, {pipeline_mode = #tpu.pipeline_mode<synchronous>, transform_indices = @transform_3, window_bounds = array<i64: 12, 512>}, {pipeline_mode = #tpu.pipeline_mode<synchronous>, transform_indices = @transform_4, window_bounds = array<i64: 12, 5>}]} {
    %c0 = arith.constant 0 : index
    %0 = memref.load %arg1[%c0] : memref<1xf32, #tpu.memory_space<smem>>
    %c0_0 = arith.constant 0 : index
    %c0_1 = arith.constant 0 : index
    %1 = vector.load %arg2[%c0_0, %c0_1] : memref<12x64xf32, #tpu.memory_space<vmem>>, vector<12x64xf32>
    %2 = vector.broadcast %0 : f32 to vector<12x64xf32>
    %3 = arith.mulf %1, %2 : vector<12x64xf32>
    %c0_2 = arith.constant 0 : index
    %c0_3 = arith.constant 0 : index
    %4 = vector.load %arg3[%c0_2, %c0_3] : memref<64x512xf32, #tpu.memory_space<vmem>>, vector<64x512xf32>
    %cst = arith.constant dense<0.000000e+00> : vector<12x512xf32>
    %5 = tpu.matmul %3, %4, %cst {dimension_numbers = #tpu.dot_dimension_numbers<[1], [0], [0], [1], [0, 0, 1, 1], [], []>} : vector<12x64xf32>, vector<64x512xf32>, vector<12x512xf32> -> vector<12x512xf32>
    %cst_4 = arith.constant dense<0xFF800000> : vector<12xf32>
    %6 = vector.multi_reduction <maximumf>, %5, %cst_4 [1] : vector<12x512xf32> to vector<12xf32>
    %7 = vector.shape_cast %6 : vector<12xf32> to vector<12x1xf32>
    %8 = vector.broadcast %7 : vector<12x1xf32> to vector<12x512xf32>
    %9 = arith.subf %5, %8 : vector<12x512xf32>
    %10 = math.exp %9 : vector<12x512xf32>
    %cst_5 = arith.constant dense<0.000000e+00> : vector<12xf32>
    %11 = vector.multi_reduction <add>, %10, %cst_5 [1] : vector<12x512xf32> to vector<12xf32>
    %12 = vector.shape_cast %11 : vector<12xf32> to vector<12x1xf32>
    %c0_6 = arith.constant 0 : index
    %c0_7 = arith.constant 0 : index
    %13 = vector.load %arg5[%c0_6, %c0_7] : memref<12x512xf32, #tpu.memory_space<vmem>>, vector<12x512xf32>
    %14 = arith.mulf %10, %13 : vector<12x512xf32>
    %c0_8 = arith.constant 0 : index
    %c0_9 = arith.constant 0 : index
    %15 = vector.load %arg4[%c0_8, %c0_9] : memref<512x5xf32, #tpu.memory_space<vmem>>, vector<512x5xf32>
    %cst_10 = arith.constant dense<0.000000e+00> : vector<12x5xf32>
    %16 = tpu.matmul %14, %15, %cst_10 {dimension_numbers = #tpu.dot_dimension_numbers<[1], [0], [0], [1], [0, 0, 1, 1], [], []>} : vector<12x512xf32>, vector<512x5xf32>, vector<12x5xf32> -> vector<12x5xf32>
    %cst_11 = arith.constant 2.000000e+00 : f32
    %17 = vector.broadcast %cst_11 : f32 to vector<12x1xf32>
    %18 = arith.divf %17, %12 : vector<12x1xf32>
    %19 = vector.broadcast %18 : vector<12x1xf32> to vector<12x5xf32>
    %20 = arith.mulf %16, %19 : vector<12x5xf32>
    %c0_12 = arith.constant 0 : index
    %c0_13 = arith.constant 0 : index
    %21 = vector.load %arg6[%c0_12, %c0_13] : memref<12x5xf32, #tpu.memory_space<vmem>>, vector<12x5xf32>
    tpu.vector_store %arg6[%c0_12, %c0_13], %20 {strides = array<i32>} : memref<12x5xf32, #tpu.memory_space<vmem>>, vector<12x5xf32>,
    return
  }
  func.func @transform_0(%arg0: i32, %arg1: memref<1xf32, #tpu.memory_space<smem>>) -> (i32, i32) {
    %c0_i32 = arith.constant 0 : i32
    %c0_i32_0 = arith.constant 0 : i32
    %c0_i32_1 = arith.constant 0 : i32
    return %c0_i32, %c0_i32_0 : i32, i32
  }
  func.func @transform_1(%arg0: i32, %arg1: memref<1xf32, #tpu.memory_space<smem>>) -> (i32, i32) {
    %c0_i32 = arith.constant 0 : i32
    %c0_i32_0 = arith.constant 0 : i32
    %c0_i32_1 = arith.constant 0 : i32
    return %c0_i32, %c0_i32_0 : i32, i32
  }
  func.func @transform_2(%arg0: i32, %arg1: memref<1xf32, #tpu.memory_space<smem>>) -> (i32, i32) {
    %c0_i32 = arith.constant 0 : i32
    %c0_i32_0 = arith.constant 0 : i32
    %c0_i32_1 = arith.constant 0 : i32
    return %c0_i32, %c0_i32_0 : i32, i32
  }
  func.func @transform_3(%arg0: i32, %arg1: memref<1xf32, #tpu.memory_space<smem>>) -> (i32, i32) {
    %c0_i32 = arith.constant 0 : i32
    %c0_i32_0 = arith.constant 0 : i32
    %c0_i32_1 = arith.constant 0 : i32
    return %c0_i32, %c0_i32_0 : i32, i32
  }
  func.func @transform_4(%arg0: i32, %arg1: memref<1xf32, #tpu.memory_space<smem>>) -> (i32, i32) {
    %c0_i32 = arith.constant 0 : i32
    %c0_i32_0 = arith.constant 0 : i32
    %c0_i32_1 = arith.constant 0 : i32
    return %c0_i32, %c0_i32_0 : i32, i32
  }
}

</mosaic_0001>

<llo_original>
// kernel: tpu_custom_call.1
$region0: #{tpu_custom_call.1}
  #allocation0 [shape = 'u32[]', space=smem, size = 0x4, offset = 0x4, fixed_abs, tag = 'smem constant byte address 0x4 - core index']
  #allocation1 [shape = 'u32[72,128]{1,0:T(1,128)}', space=vmem, size = 0x9000, scoped, tag = 'internal scratch']
  #allocation2 [shape = 's32[1]{0}', space=sflag, size = 0x4, scoped, tag = 'scoped memory for tpu_custom_call.1']
  #allocation3 [shape = 'f32[1]{0:T(128)S(6)}', space=smem, size = 0x200, scoped, tag = 'prefetched SMEM operand 0']
  %s0 = inlined_call_operand.<no memory space> [shape: f32[1], index: 0, kind: input, shape index: {}]
  %s1 = inlined_call_operand.vmem [shape: f32[12,64], index: 1, kind: input, shape index: {}]
  %s2 = inlined_call_operand.vmem [shape: f32[64,512], index: 2, kind: input, shape index: {}]
  %s3 = inlined_call_operand.vmem [shape: f32[512,5], index: 3, kind: input, shape index: {}]
  %s4 = inlined_call_operand.vmem [shape: f32[12,512], index: 4, kind: input, shape index: {}]
  %s5 = inlined_call_operand.vmem [shape: f32[12,5], index: 5, kind: output, shape index: {}]
  %s6 = sld [smem:[#allocation0]]
  $region26: #{tpu_custom_call.1} parent=0
    _
  %s8 = ssub.s32 1, %s6
  %s9 = scalar_select 0, %s8, %s6
  %10 = sst [smem:[#allocation3]] %s0
  // Predicated region
  $region2: #{tpu_custom_call.1} parent=0 // pred_check
    _
  $region3: #{tpu_custom_call.1} parent=0 // pred_check_branch
    %12 = sbr.rel (0) target = $region5
  $region4: #{tpu_custom_call.1} parent=0 // pred_region
    _
  $region5: #{tpu_custom_call.1} parent=0 // pred_fallthru
    _
  // Predicated region
  $region6: #{tpu_custom_call.1} parent=0 // pred_check
    _
  $region7: #{tpu_custom_call.1} parent=0 // pred_check_branch
    %14 = sbr.rel (0) target = $region9
  $region8: #{tpu_custom_call.1} parent=0 // pred_region
    _
  $region9: #{tpu_custom_call.1} parent=0 // pred_fallthru
    _
  // Predicated region
  $region10: #{tpu_custom_call.1} parent=0 // pred_check
    _
  $region11: #{tpu_custom_call.1} parent=0 // pred_check_branch
    %16 = sbr.rel (0) target = $region13
  $region12: #{tpu_custom_call.1} parent=0 // pred_region
    _
  $region13: #{tpu_custom_call.1} parent=0 // pred_fallthru
    _
  // Predicated region
  $region14: #{tpu_custom_call.1} parent=0 // pred_check
    _
  $region15: #{tpu_custom_call.1} parent=0 // pred_check_branch
    %18 = sbr.rel (0) target = $region17
  $region16: #{tpu_custom_call.1} parent=0 // pred_region
    _
  $region17: #{tpu_custom_call.1} parent=0 // pred_fallthru
    _
  %s19 = sld [smem:[#allocation3]]
  %v20 = vld [vmem:[%s1] sm:$0xff]
  %v21 = vld [vmem:[%s1 + $0x8] sm:$0xf]
  %v22 = vstv %s19
  %v23 = vmul.f32 %v20, %v22
  %v24 = vmul.f32 %v21, %v22
  %v25 = vld [vmem:[%s2] sm:$0xff]
  %v26 = vld [vmem:[%s2 + $0x8] sm:$0xff]
  %v27 = vld [vmem:[%s2 + $0x10] sm:$0xff]
  %v28 = vld [vmem:[%s2 + $0x18] sm:$0xff]
  %v29 = vld [vmem:[%s2 + $0x20] sm:$0xff]
  %v30 = vld [vmem:[%s2 + $0x28] sm:$0xff]
  %v31 = vld [vmem:[%s2 + $0x30] sm:$0xff]
  %v32 = vld [vmem:[%s2 + $0x38] sm:$0xff]
  %v33 = vld [vmem:[%s2 + $0x40] sm:$0xff]
  %v34 = vld [vmem:[%s2 + $0x48] sm:$0xff]
  %v35 = vld [vmem:[%s2 + $0x50] sm:$0xff]
  %v36 = vld [vmem:[%s2 + $0x58] sm:$0xff]
  %v37 = vld [vmem:[%s2 + $0x60] sm:$0xff]
  %v38 = vld [vmem:[%s2 + $0x68] sm:$0xff]
  %v39 = vld [vmem:[%s2 + $0x70] sm:$0xff]
  %v40 = vld [vmem:[%s2 + $0x78] sm:$0xff]
  %v41 = vld [vmem:[%s2 + $0x80] sm:$0xff]
  %v42 = vld [vmem:[%s2 + $0x88] sm:$0xff]
  %v43 = vld [vmem:[%s2 + $0x90] sm:$0xff]
  %v44 = vld [vmem:[%s2 + $0x98] sm:$0xff]
  %v45 = vld [vmem:[%s2 + $0xa0] sm:$0xff]
  %v46 = vld [vmem:[%s2 + $0xa8] sm:$0xff]
  %v47 = vld [vmem:[%s2 + $0xb0] sm:$0xff]
  %v48 = vld [vmem:[%s2 + $0xb8] sm:$0xff]
  %v49 = vld [vmem:[%s2 + $0xc0] sm:$0xff]
  %v50 = vld [vmem:[%s2 + $0xc8] sm:$0xff]
  %v51 = vld [vmem:[%s2 + $0xd0] sm:$0xff]
  %v52 = vld [vmem:[%s2 + $0xd8] sm:$0xff]
  %v53 = vld [vmem:[%s2 + $0xe0] sm:$0xff]
  %v54 = vld [vmem:[%s2 + $0xe8] sm:$0xff]
  %v55 = vld [vmem:[%s2 + $0xf0] sm:$0xff]
  %v56 = vld [vmem:[%s2 + $0xf8] sm:$0xff]
  %vm57 = vcmask 523264
  %v59 = vsel %vm57, %v23, 0
  %v62 = vsel %vm57, %v24, 0
  %64 = vmatpush.msra.mxu0 0.0
  %65 = vmatpush.msra.mxu0 0.0
  %66 = vmatpush.msra.mxu0 0.0
  %67 = vmatpush.msra.mxu0 0.0
  %68 = vmatpush.msra.mxu0 0.0
  %69 = vmatpush.msra.mxu0 0.0
  %70 = vmatpush.msra.mxu0 0.0
  %71 = vmatpush.msra.mxu0 0.0
  %72 = vmatpush.msra.mxu0 %v53
  %73 = vmatpush.msra.mxu0 %v49
  %74 = vmatpush.msra.mxu0 %v45
  %75 = vmatpush.msra.mxu0 %v41
  %76 = vmatpush.msra.mxu0 %v37
  %77 = vmatpush.msra.mxu0 %v33
  %78 = vmatpush.msra.mxu0 %v29
  %79 = vmatpush.msra.mxu0 %v25
  %80 = vmatmul.f32.gmra.mxu0 %v59
  %v81 = vpop.f32.mrf.mxu0
  %v82 = vadd.f32 0.0, %v81
  %83 = vmatmul.f32.gmra.mxu0 %v62
  %v84 = vpop.f32.mrf.mxu0
  %v85 = vadd.f32 0.0, %v84
  %86 = vdwg.mxu0
  %87 = vmatpush.msra.mxu0 0.0
  %88 = vmatpush.msra.mxu0 0.0
  %89 = vmatpush.msra.mxu0 0.0
  %90 = vmatpush.msra.mxu0 0.0
  %91 = vmatpush.msra.mxu0 0.0
  %92 = vmatpush.msra.mxu0 0.0
  %93 = vmatpush.msra.mxu0 0.0
  %94 = vmatpush.msra.mxu0 0.0
  %95 = vmatpush.msra.mxu0 %v54
  %96 = vmatpush.msra.mxu0 %v50
  %97 = vmatpush.msra.mxu0 %v46
  %98 = vmatpush.msra.mxu0 %v42
  %99 = vmatpush.msra.mxu0 %v38
  %100 = vmatpush.msra.mxu0 %v34
  %101 = vmatpush.msra.mxu0 %v30
  %102 = vmatpush.msra.mxu0 %v26
  %103 = vmatmul.f32.gmra.mxu0 %v59
  %v104 = vpop.f32.mrf.mxu0
  %v105 = vadd.f32 0.0, %v104
  %106 = vmatmul.f32.gmra.mxu0 %v62
  %v107 = vpop.f32.mrf.mxu0
  %v108 = vadd.f32 0.0, %v107
  %109 = vdwg.mxu0
  %110 = vmatpush.msra.mxu0 0.0
  %111 = vmatpush.msra.mxu0 0.0
  %112 = vmatpush.msra.mxu0 0.0
  %113 = vmatpush.msra.mxu0 0.0
  %114 = vmatpush.msra.mxu0 0.0
  %115 = vmatpush.msra.mxu0 0.0
  %116 = vmatpush.msra.mxu0 0.0
  %117 = vmatpush.msra.mxu0 0.0
  %118 = vmatpush.msra.mxu0 %v55
  %119 = vmatpush.msra.mxu0 %v51
  %120 = vmatpush.msra.mxu0 %v47
  %121 = vmatpush.msra.mxu0 %v43
  %122 = vmatpush.msra.mxu0 %v39
  %123 = vmatpush.msra.mxu0 %v35
  %124 = vmatpush.msra.mxu0 %v31
  %125 = vmatpush.msra.mxu0 %v27
  %126 = vmatmul.f32.gmra.mxu0 %v59
  %v127 = vpop.f32.mrf.mxu0
  %v128 = vadd.f32 0.0, %v127
  %129 = vmatmul.f32.gmra.mxu0 %v62
  %v130 = vpop.f32.mrf.mxu0
  %v131 = vadd.f32 0.0, %v130
  %132 = vdwg.mxu0
  %133 = vmatpush.msra.mxu0 0.0
  %134 = vmatpush.msra.mxu0 0.0
  %135 = vmatpush.msra.mxu0 0.0
  %136 = vmatpush.msra.mxu0 0.0
  %137 = vmatpush.msra.mxu0 0.0
  %138 = vmatpush.msra.mxu0 0.0
  %139 = vmatpush.msra.mxu0 0.0
  %140 = vmatpush.msra.mxu0 0.0
  %141 = vmatpush.msra.mxu0 %v56
  %142 = vmatpush.msra.mxu0 %v52
  %143 = vmatpush.msra.mxu0 %v48
  %144 = vmatpush.msra.mxu0 %v44
  %145 = vmatpush.msra.mxu0 %v40
  %146 = vmatpush.msra.mxu0 %v36
  %147 = vmatpush.msra.mxu0 %v32
  %148 = vmatpush.msra.mxu0 %v28
  %149 = vmatmul.f32.gmra.mxu0 %v59
  %v150 = vpop.f32.mrf.mxu0
  %v151 = vadd.f32 0.0, %v150
  %152 = vmatmul.f32.gmra.mxu0 %v62
  %v153 = vpop.f32.mrf.mxu0
  %v154 = vadd.f32 0.0, %v153
  %155 = vdwg.mxu0
  %v156 = vmax.f32 %v82, %v128
  %v157 = vmax.f32 %v105, %v151
  %v158 = vmax.f32 %v156, %v157
  %159 = vmax.xlane.f32.xlu0 %v158
  %v160 = vpop.xlane.xlu0 %159
  %vm161 = vcmask 1043456
  %v162 = vsel %vm161, %v85, -inf
  %v163 = vsel %vm161, %v108, -inf
  %v164 = vsel %vm161, %v131, -inf
  %v165 = vmax.f32 %v162, %v164
  %v166 = vsel %vm161, %v154, -inf
  %v167 = vmax.f32 %v163, %v166
  %v168 = vmax.f32 %v165, %v167
  %169 = vmax.xlane.f32.xlu0 %v168
  %v170 = vpop.xlane.xlu0 %169
  %v171 = vsub.f32 %v82, %v160
  %v172 = vsub.f32 %v105, %v160
  %v173 = vsub.f32 %v128, %v160
  %v174 = vsub.f32 %v151, %v160
  %v175 = vsub.f32 %v85, %v170
  %v176 = vsub.f32 %v108, %v170
  %v177 = vsub.f32 %v131, %v170
  %v178 = vsub.f32 %v154, %v170
  %v179 = vmul.f32 %v171, 1.442695
  %v180 = vpow.pop %v179
  %v181 = vmul.f32 %v172, 1.442695
  %v182 = vpow.pop %v181
  %v183 = vmul.f32 %v173, 1.442695
  %v184 = vpow.pop %v183
  %v185 = vmul.f32 %v174, 1.442695
  %v186 = vpow.pop %v185
  %v187 = vmul.f32 %v175, 1.442695
  %v188 = vpow.pop %v187
  %v189 = vmul.f32 %v176, 1.442695
  %v190 = vpow.pop %v189
  %v191 = vmul.f32 %v177, 1.442695
  %v192 = vpow.pop %v191
  %v193 = vmul.f32 %v178, 1.442695
  %v194 = vpow.pop %v193
  %v195 = vadd.f32 %v180, %v182
  %v196 = vadd.f32 %v195, %v184
  %v197 = vadd.f32 %v196, %v186
  %198 = vadd.xlane.f32.xlu0 %v197
  %v199 = vpop.xlane.xlu0 %198
  %v200 = vsel %vm161, %v188, 0.0
  %v201 = vsel %vm161, %v190, 0.0
  %v202 = vadd.f32 %v200, %v201
  %v203 = vsel %vm161, %v192, 0.0
  %v204 = vadd.f32 %v202, %v203
  %v205 = vsel %vm161, %v194, 0.0
  %v206 = vadd.f32 %v204, %v205
  %207 = vadd.xlane.f32.xlu0 %v206
  %v208 = vpop.xlane.xlu0 %207
  %v209 = vld [vmem:[%s4] sm:$0xff]
  %v210 = vld [vmem:[%s4 + $0x8] sm:$0xff]
  %v211 = vld [vmem:[%s4 + $0x10] sm:$0xff]
  %v212 = vld [vmem:[%s4 + $0x18] sm:$0xff]
  %v213 = vld [vmem:[%s4 + $0x20] sm:$0xf]
  %v214 = vld [vmem:[%s4 + $0x28] sm:$0xf]
  %v215 = vld [vmem:[%s4 + $0x30] sm:$0xf]
  %v216 = vld [vmem:[%s4 + $0x38] sm:$0xf]
  %v217 = vmul.f32 %v180, %v209
  %v218 = vmul.f32 %v182, %v210
  %v219 = vmul.f32 %v184, %v211
  %v220 = vmul.f32 %v186, %v212
  %v221 = vmul.f32 %v188, %v213
  %v222 = vmul.f32 %v190, %v214
  %v223 = vmul.f32 %v192, %v215
  %v224 = vmul.f32 %v194, %v216
  %v225 = vld [vmem:[%s3] sm:$0xff]
  %v226 = vld [vmem:[%s3 + $0x8] sm:$0xff]
  %v227 = vld [vmem:[%s3 + $0x10] sm:$0xff]
  %v228 = vld [vmem:[%s3 + $0x18] sm:$0xff]
  %v229 = vld [vmem:[%s3 + $0x20] sm:$0xff]
  %v230 = vld [vmem:[%s3 + $0x28] sm:$0xff]
  %v231 = vld [vmem:[%s3 + $0x30] sm:$0xff]
  %v232 = vld [vmem:[%s3 + $0x38] sm:$0xff]
  %v233 = vld [vmem:[%s3 + $0x40] sm:$0xff]
  %v234 = vld [vmem:[%s3 + $0x48] sm:$0xff]
  %v235 = vld [vmem:[%s3 + $0x50] sm:$0xff]
  %v236 = vld [vmem:[%s3 + $0x58] sm:$0xff]
  %v237 = vld [vmem:[%s3 + $0x60] sm:$0xff]
  %v238 = vld [vmem:[%s3 + $0x68] sm:$0xff]
  %v239 = vld [vmem:[%s3 + $0x70] sm:$0xff]
  %v240 = vld [vmem:[%s3 + $0x78] sm:$0xff]
  %v241 = vld [vmem:[%s3 + $0x80] sm:$0xff]
  %v242 = vld [vmem:[%s3 + $0x88] sm:$0xff]
  %v243 = vld [vmem:[%s3 + $0x90] sm:$0xff]
  %v244 = vld [vmem:[%s3 + $0x98] sm:$0xff]
  %v245 = vld [vmem:[%s3 + $0xa0] sm:$0xff]
  %v246 = vld [vmem:[%s3 + $0xa8] sm:$0xff]
  %v247 = vld [vmem:[%s3 + $0xb0] sm:$0xff]
  %v248 = vld [vmem:[%s3 + $0xb8] sm:$0xff]
  %v249 = vld [vmem:[%s3 + $0xc0] sm:$0xff]
  %v250 = vld [vmem:[%s3 + $0xc8] sm:$0xff]
  %v251 = vld [vmem:[%s3 + $0xd0] sm:$0xff]
  %v252 = vld [vmem:[%s3 + $0xd8] sm:$0xff]
  %v253 = vld [vmem:[%s3 + $0xe0] sm:$0xff]
  %v254 = vld [vmem:[%s3 + $0xe8] sm:$0xff]
  %v255 = vld [vmem:[%s3 + $0xf0] sm:$0xff]
  %v256 = vld [vmem:[%s3 + $0xf8] sm:$0xff]
  %v257 = vld [vmem:[%s3 + $0x100] sm:$0xff]
  %v258 = vld [vmem:[%s3 + $0x108] sm:$0xff]
  %v259 = vld [vmem:[%s3 + $0x110] sm:$0xff]
  %v260 = vld [vmem:[%s3 + $0x118] sm:$0xff]
  %v261 = vld [vmem:[%s3 + $0x120] sm:$0xff]
  %v262 = vld [vmem:[%s3 + $0x128] sm:$0xff]
  %v263 = vld [vmem:[%s3 + $0x130] sm:$0xff]
  %v264 = vld [vmem:[%s3 + $0x138] sm:$0xff]
  %v265 = vld [vmem:[%s3 + $0x140] sm:$0xff]
  %v266 = vld [vmem:[%s3 + $0x148] sm:$0xff]
  %v267 = vld [vmem:[%s3 + $0x150] sm:$0xff]
  %v268 = vld [vmem:[%s3 + $0x158] sm:$0xff]
  %v269 = vld [vmem:[%s3 + $0x160] sm:$0xff]
  %v270 = vld [vmem:[%s3 + $0x168] sm:$0xff]
  %v271 = vld [vmem:[%s3 + $0x170] sm:$0xff]
  %v272 = vld [vmem:[%s3 + $0x178] sm:$0xff]
  %v273 = vld [vmem:[%s3 + $0x180] sm:$0xff]
  %v274 = vld [vmem:[%s3 + $0x188] sm:$0xff]
  %v275 = vld [vmem:[%s3 + $0x190] sm:$0xff]
  %v276 = vld [vmem:[%s3 + $0x198] sm:$0xff]
  %v277 = vld [vmem:[%s3 + $0x1a0] sm:$0xff]
  %v278 = vld [vmem:[%s3 + $0x1a8] sm:$0xff]
  %v279 = vld [vmem:[%s3 + $0x1b0] sm:$0xff]
  %v280 = vld [vmem:[%s3 + $0x1b8] sm:$0xff]
  %v281 = vld [vmem:[%s3 + $0x1c0] sm:$0xff]
  %v282 = vld [vmem:[%s3 + $0x1c8] sm:$0xff]
  %v283 = vld [vmem:[%s3 + $0x1d0] sm:$0xff]
  %v284 = vld [vmem:[%s3 + $0x1d8] sm:$0xff]
  %v285 = vld [vmem:[%s3 + $0x1e0] sm:$0xff]
  %v286 = vld [vmem:[%s3 + $0x1e8] sm:$0xff]
  %v287 = vld [vmem:[%s3 + $0x1f0] sm:$0xff]
  %v288 = vld [vmem:[%s3 + $0x1f8] sm:$0xff]
  %289 = vmatpush.msra.mxu0 %v240
  %290 = vmatpush.msra.mxu0 %v239
  %291 = vmatpush.msra.mxu0 %v238
  %292 = vmatpush.msra.mxu0 %v237
  %293 = vmatpush.msra.mxu0 %v236
  %294 = vmatpush.msra.mxu0 %v235
  %295 = vmatpush.msra.mxu0 %v234
  %296 = vmatpush.msra.mxu0 %v233
  %297 = vmatpush.msra.mxu0 %v232
  %298 = vmatpush.msra.mxu0 %v231
  %299 = vmatpush.msra.mxu0 %v230
  %300 = vmatpush.msra.mxu0 %v229
  %301 = vmatpush.msra.mxu0 %v228
  %302 = vmatpush.msra.mxu0 %v227
  %303 = vmatpush.msra.mxu0 %v226
  %304 = vmatpush.msra.mxu0 %v225
  %305 = vmatmul.f32.gmra.mxu0 %v217
  %v306 = vpop.f32.mrf.mxu0
  %v307 = vadd.f32 0.0, %v306
  %308 = vmatmul.f32.gmra.mxu0 %v221
  %v309 = vpop.f32.mrf.mxu0
  %v310 = vadd.f32 0.0, %v309
  %311 = vdwg.mxu0
  %312 = vmatpush.msra.mxu0 %v256
  %313 = vmatpush.msra.mxu0 %v255
  %314 = vmatpush.msra.mxu0 %v254
  %315 = vmatpush.msra.mxu0 %v253
  %316 = vmatpush.msra.mxu0 %v252
  %317 = vmatpush.msra.mxu0 %v251
  %318 = vmatpush.msra.mxu0 %v250
  %319 = vmatpush.msra.mxu0 %v249
  %320 = vmatpush.msra.mxu0 %v248
  %321 = vmatpush.msra.mxu0 %v247
  %322 = vmatpush.msra.mxu0 %v246
  %323 = vmatpush.msra.mxu0 %v245
  %324 = vmatpush.msra.mxu0 %v244
  %325 = vmatpush.msra.mxu0 %v243
  %326 = vmatpush.msra.mxu0 %v242
  %327 = vmatpush.msra.mxu0 %v241
  %328 = vmatmul.f32.gmra.mxu0 %v218
  %v329 = vpop.f32.mrf.mxu0
  %v330 = vadd.f32 %v307, %v329
  %331 = vmatmul.f32.gmra.mxu0 %v222
  %v332 = vpop.f32.mrf.mxu0
  %v333 = vadd.f32 %v310, %v332
  %334 = vdwg.mxu0
  %335 = vmatpush.msra.mxu0 %v272
  %336 = vmatpush.msra.mxu0 %v271
  %337 = vmatpush.msra.mxu0 %v270
  %338 = vmatpush.msra.mxu0 %v269
  %339 = vmatpush.msra.mxu0 %v268
  %340 = vmatpush.msra.mxu0 %v267
  %341 = vmatpush.msra.mxu0 %v266
  %342 = vmatpush.msra.mxu0 %v265
  %343 = vmatpush.msra.mxu0 %v264
  %344 = vmatpush.msra.mxu0 %v263
  %345 = vmatpush.msra.mxu0 %v262
  %346 = vmatpush.msra.mxu0 %v261
  %347 = vmatpush.msra.mxu0 %v260
  %348 = vmatpush.msra.mxu0 %v259
  %349 = vmatpush.msra.mxu0 %v258
  %350 = vmatpush.msra.mxu0 %v257
  %351 = vmatmul.f32.gmra.mxu0 %v219
  %v352 = vpop.f32.mrf.mxu0
  %v353 = vadd.f32 %v330, %v352
  %354 = vmatmul.f32.gmra.mxu0 %v223
  %v355 = vpop.f32.mrf.mxu0
  %v356 = vadd.f32 %v333, %v355
  %357 = vdwg.mxu0
  %358 = vmatpush.msra.mxu0 %v288
  %359 = vmatpush.msra.mxu0 %v287
  %360 = vmatpush.msra.mxu0 %v286
  %361 = vmatpush.msra.mxu0 %v285
  %362 = vmatpush.msra.mxu0 %v284
  %363 = vmatpush.msra.mxu0 %v283
  %364 = vmatpush.msra.mxu0 %v282
  %365 = vmatpush.msra.mxu0 %v281
  %366 = vmatpush.msra.mxu0 %v280
  %367 = vmatpush.msra.mxu0 %v279
  %368 = vmatpush.msra.mxu0 %v278
  %369 = vmatpush.msra.mxu0 %v277
  %370 = vmatpush.msra.mxu0 %v276
  %371 = vmatpush.msra.mxu0 %v275
  %372 = vmatpush.msra.mxu0 %v274
  %373 = vmatpush.msra.mxu0 %v273
  %374 = vmatmul.f32.gmra.mxu0 %v220
  %v375 = vpop.f32.mrf.mxu0
  %v376 = vadd.f32 %v353, %v375
  %377 = vmatmul.f32.gmra.mxu0 %v224
  %v378 = vpop.f32.mrf.mxu0
  %v379 = vadd.f32 %v356, %v378
  %380 = vdwg.mxu0
  %v381 = vrcp.pop %v199
  %v382 = vmul.f32 %v199, %v381
  %v383 = vsub.f32 1.0, %v382
  %v384 = vmul.f32 %v381, %v383
  %v385 = vadd.f32 %v381, %v384
  %vm386 = vweird.f32 %v199
  %vm387 = vweird.f32 %v381
  %vm388 = vmor %vm386, %vm387
  %v389 = vsel %vm388, %v381, %v385
  %v390 = vand.u32 2147483647, %v199
  %vm391 = vcmp.eq.f32.partialorder %v390, 8.507059e+37
  %v392 = vand.u32 %v199, 2147483648
  %v393 = vor.u32 1.1754944e-38, %v392
  %v394 = vsel %vm391, %v393, %v389
  %v395 = vmul.f32 2.0, %v394
  %v396 = vrcp.pop %v208
  %v397 = vmul.f32 %v208, %v396
  %v398 = vsub.f32 1.0, %v397
  %v399 = vmul.f32 %v396, %v398
  %v400 = vadd.f32 %v396, %v399
  %vm401 = vweird.f32 %v208
  %vm402 = vweird.f32 %v396
  %vm403 = vmor %vm401, %vm402
  %v404 = vsel %vm403, %v396, %v400
  %v405 = vand.u32 2147483647, %v208
  %vm406 = vcmp.eq.f32.partialorder %v405, 8.507059e+37
  %v407 = vand.u32 %v208, 2147483648
  %v408 = vor.u32 1.1754944e-38, %v407
  %v409 = vsel %vm406, %v408, %v404
  %v410 = vmul.f32 2.0, %v409
  %v411 = vmul.f32 %v376, %v395
  %v412 = vmul.f32 %v379, %v410
  %vm413 = vcmask 39936
  %414 = vst.msk [vmem:[%s5] sm:$0xff] %vm413, %v411
  %vm415 = vcmask 35840
  %416 = vst.msk [vmem:[%s5 + $0x8] sm:$0xf] %vm415, %v412
  // Predicated region
  $region18: #{tpu_custom_call.1} parent=0 // pred_check
    _
  $region19: #{tpu_custom_call.1} parent=0 // pred_check_branch
    %418 = sbr.rel (0) target = $region21
  $region20: #{tpu_custom_call.1} parent=0 // pred_region
    _
  $region21: #{tpu_custom_call.1} parent=0 // pred_fallthru
    _
  // Predicated region
  $region22: #{tpu_custom_call.1} parent=0 // pred_check
    _
  $region23: #{tpu_custom_call.1} parent=0 // pred_check_branch
    %420 = sbr.rel (0) target = $region25
  $region24: #{tpu_custom_call.1} parent=0 // pred_region
    _
  $region25: #{tpu_custom_call.1} parent=0 // pred_fallthru
    _

</llo_original>
